<compile_context>
chip_gen: v7x
topology: tpu7x:2x2x1
jax: 0.10.0
libtpu: 0.0.40
codegen_flags: <defaults>
</compile_context>

<pallas_src>
import functools

import jax
import jax.numpy as jnp
from jax import lax
from jax.experimental import pallas as pl
from jax.experimental.pallas import tpu as pltpu

# Fixed filters from the module's __init__ (deterministic, no checkpoint).
F_X = ((-1.0, 0.0, 1.0), (-2.0, 0.0, 2.0), (-1.0, 0.0, 1.0))   # = [1,2,1]^T x [-1,0,1]
F_Y = ((-1.0, -2.0, -1.0), (0.0, 0.0, 0.0), (1.0, 2.0, 1.0))   # = [-1,0,1]^T x [1,2,1]


def _rot(v, k):
    """result[..., i] = v[..., (i - k) % size] along the last (lane) axis.

    pltpu.roll follows jnp.roll's convention; only non-negative shifts are
    emitted (negative shifts are expressed as size - k).
    """
    size = v.shape[-1]
    k = k % size
    if k == 0:
        return v
    return pltpu.roll(v, k, axis=v.ndim - 1)


# ---------------------------------------------------------------------------
def _spatial_grad_kernel(x_ref, o_ref, *, width, hw):
    # x_ref: (tb, H*W)   tb flattened channel planes (row-major h*W + w)
    # o_ref: (tb, 2*H*W) -> [:, :hw] = gx,  [:, hw:] = gy
    x = x_ref[...].astype(jnp.float32)

    # Edge masks reproducing F.conv2d's zero padding (the lane rolls wrap).
    idx = lax.broadcasted_iota(jnp.int32, (1, hw), 1)
    col = idx % width
    left_ok = (col > 0).astype(jnp.float32)            # (h, w-1) exists
    right_ok = (col < width - 1).astype(jnp.float32)   # (h, w+1) exists
    up_ok = (idx >= width).astype(jnp.float32)         # (h-1, w) exists
    down_ok = (idx < hw - width).astype(jnp.float32)   # (h+1, w) exists

    # Horizontal pass: +/-1 lane shifts (XLU).
    xl = _rot(x, 1) * left_ok          # x(h, w-1)
    xr = _rot(x, hw - 1) * right_ok    # x(h, w+1)   (shift -1 == +hw-1)
    a = xr - xl                        # [-1, 0, 1]_h  (feeds gx)
    b = xl + 2.0 * x + xr              # [ 1, 2, 1]_h  (feeds gy)

    # Vertical pass: +/-W lane shifts.
    gx = _rot(a, width) * up_ok + 2.0 * a + _rot(a, hw - width) * down_ok
    gy = _rot(b, hw - width) * down_ok - _rot(b, width) * up_ok

    # Two direct lane-dense slice stores (no concatenate temp on the way out).
    o_ref[:, pl.ds(0, hw)] = gx.astype(o_ref.dtype)
    o_ref[:, pl.ds(hw, hw)] = gy.astype(o_ref.dtype)


# ---------------------------------------------------------------------------
def _choose_block_planes(num_planes, plane_bytes, target_bytes, sublane_mult):
    """Pick how many channel planes to process per grid step.

    Requirements: multiple of `sublane_mult` (or the full extent), within the
    VMEM byte budget, and small enough that the grid has >=2 steps whenever
    the plane count allows it (pipelining + v7x megacore sharding).
    """
    if num_planes <= sublane_mult:
        return int(num_planes)   # full extent: always a legal block dim
    budget = max(1, target_bytes // max(plane_bytes, 1))
    budget = max(sublane_mult, (budget // sublane_mult) * sublane_mult)
    half = max(sublane_mult,
               (((num_planes + 1) // 2) // sublane_mult) * sublane_mult)
    return int(min(budget, half))


def spatial_gradients(image: jax.Array, *, out_dtype=None,
                      target_block_bytes: int = 1 << 20) -> jax.Array:
    """image: (N, C, H, W) -> (N, 2*C, H, W), [gx_c, gy_c] channel pairs."""
    N, C, H, W = image.shape
    P, HW = N * C, H * W
    in_dtype = jnp.dtype(image.dtype)
    out_dtype = in_dtype if out_dtype is None else jnp.dtype(out_dtype)

    # Free (contiguous) reshape: one row per (n, c) plane; spatial dims
    # flattened into the lane axis so loads and stores are lane-dense.
    x_flat = image.reshape(P, HW)

    itemsize = in_dtype.itemsize
    sublane_mult = {4: 8, 2: 16, 1: 32}.get(itemsize, 8)
    tb = _choose_block_planes(P, HW * itemsize, target_block_bytes,
                              sublane_mult)
    grid = (pl.cdiv(P, tb),)   # tail block (if any) is masked by Pallas

    # VMEM budget: double-buffered in/out blocks + whole-block f32 temps,
    # plus slack. Default blocks keep this ~32 MiB (fits v7x's 64 MiB VMEM).
    in_block = tb * HW * itemsize
    out_block = tb * 2 * HW * out_dtype.itemsize
    f32_block = tb * HW * 4
    vmem_est = 2 * (in_block + out_block) + 14 * f32_block + (2 << 20)
    vmem_limit = int(min(max(vmem_est, 32 << 20), 64 << 20))

    kernel = functools.partial(_spatial_grad_kernel, width=W, hw=HW)

    out_flat = pl.pallas_call(
        kernel,
        out_shape=jax.ShapeDtypeStruct((P, 2 * HW), out_dtype),
        grid_spec=pltpu.PrefetchScalarGridSpec(
            num_scalar_prefetch=0,
            grid=grid,
            in_specs=[pl.BlockSpec((tb, HW), lambda i: (i, 0))],
            out_specs=pl.BlockSpec((tb, 2 * HW), lambda i: (i, 0)),
        ),
        compiler_params=pltpu.CompilerParams(
            # Plane-block axis shards across both v7x TensorCores; no-op on
            # single-TC v5e/v6e.
            dimension_semantics=("parallel",),
            vmem_limit_bytes=vmem_limit,
        ),
    )(x_flat)

    # (P, 2*HW) row-major is exactly (N, 2C, H, W) with [gx_c, gy_c] pairs.
    return out_flat.reshape(N, 2 * C, H, W)


# ---------------------------------------------------------------------------
def _reference(image: jax.Array) -> jax.Array:
    """Pure-JAX reference: F.conv2d(ch, cat(Dx,Dy), padding=1) per channel."""
    fx = jnp.array(F_X, jnp.float32)
    fy = jnp.array(F_Y, jnp.float32)
    D = jnp.stack([fx, fy], axis=0)[:, None, :, :]     # (2, 1, 3, 3) OIHW
    N, C, H, W = image.shape
    outs = []
    for c in range(C):
        ch = image[:, c:c + 1, :, :].astype(jnp.float32)
        g = lax.conv_general_dilated(
            ch, D, window_strides=(1, 1), padding=((1, 1), (1, 1)),
            dimension_numbers=("NCHW", "OIHW", "NCHW"),
            precision=lax.Precision.HIGHEST)
        outs.append(g)
    return jnp.concatenate(outs, axis=1)


if __name__ == "__main__":
    k1, k2 = jax.random.split(jax.random.PRNGKey(0))

    # Primary shape implied by the module's forward (NCHW image).
    N, C, H, W = 2, 4, 16, 16
    x = jax.random.normal(k1, (N, C, H, W), dtype=jnp.float32)
    out = jax.block_until_ready(spatial_gradients(x))
    ref = _reference(x)
    assert out.shape == (N, 2 * C, H, W), out.shape
    assert jnp.allclose(out, ref, atol=1e-5, rtol=1e-5), (
        float(jnp.max(jnp.abs(out - ref))))

    # Second shape: N*C is not a multiple of the plane block -> exercises the
    # cdiv grid with a masked tail block.
    N2, C2 = 3, 4
    x2 = jax.random.normal(k2, (N2, C2, H, W), dtype=jnp.float32)
    out2 = jax.block_until_ready(spatial_gradients(x2))
    ref2 = _reference(x2)
    assert out2.shape == (N2, 2 * C2, H, W), out2.shape
    assert jnp.allclose(out2, ref2, atol=1e-5, rtol=1e-5), (
        float(jnp.max(jnp.abs(out2 - ref2))))

    print("KERNEL_OK")
</pallas_src>

<mosaic_0001>
module attributes {stable_mosaic.version = 11 : i64} {
  func.func @_spatial_grad_kernel(%arg0: i32, %arg1: memref<8x256xf32, #tpu.memory_space<vmem>>, %arg2: memref<8x512xf32, #tpu.memory_space<vmem>>) attributes {dimension_semantics = [#tpu.dimension_semantics<parallel>], iteration_bounds = array<i64: 1>, scalar_prefetch = 0 : i64, scratch_operands = 0 : i64, tpu.core_type = #tpu.core_type<tc>, window_params = [{transform_indices = @transform_0, window_bounds = array<i64: 8, 256>}, {transform_indices = @transform_1, window_bounds = array<i64: 8, 512>}]} {
    %c0 = arith.constant 0 : index
    %c0_0 = arith.constant 0 : index
    %0 = vector.load %arg1[%c0, %c0_0] : memref<8x256xf32, #tpu.memory_space<vmem>>, vector<8x256xf32>
    %1 = tpu.iota {dimensions = array<i32: 1>} : vector<1x256xi32>
    %c16_i32 = arith.constant 16 : i32
    %c0_i32 = arith.constant 0 : i32
    %2 = arith.cmpi eq, %c16_i32, %c0_i32 : i32
    %c1_i32 = arith.constant 1 : i32
    %3 = arith.select %2, %c1_i32, %c16_i32 : i32
    %4 = vector.broadcast %3 : i32 to vector<1x256xi32>
    %5 = arith.remsi %1, %4 : vector<1x256xi32>
    %c0_i32_1 = arith.constant 0 : i32
    %6 = vector.broadcast %c0_i32_1 : i32 to vector<1x256xi32>
    %7 = arith.cmpi ne, %5, %6 : vector<1x256xi32>
    %c0_i32_2 = arith.constant 0 : i32
    %8 = vector.broadcast %c0_i32_2 : i32 to vector<1x256xi32>
    %9 = arith.cmpi slt, %5, %8 : vector<1x256xi32>
    %c0_i32_3 = arith.constant 0 : i32
    %10 = arith.cmpi slt, %3, %c0_i32_3 : i32
    %11 = vector.broadcast %10 : i1 to vector<1x256xi1>
    %12 = vector.broadcast %11 : vector<1x256xi1> to vector<1x256xi1>
    %13 = arith.xori %9, %12 : vector<1x256xi1>
    %14 = arith.andi %13, %7 : vector<1x256xi1>
    %15 = vector.broadcast %3 : i32 to vector<1x256xi32>
    %16 = arith.addi %5, %15 : vector<1x256xi32>
    %17 = arith.select %14, %16, %5 : vector<1x256xi1>, vector<1x256xi32>
    %c0_i32_4 = arith.constant 0 : i32
    %18 = vector.broadcast %c0_i32_4 : i32 to vector<1x256xi32>
    %19 = arith.cmpi sgt, %17, %18 : vector<1x256xi32>
    %20 = arith.extui %19 : vector<1x256xi1> to vector<1x256xi32>
    %21 = arith.sitofp %20 : vector<1x256xi32> to vector<1x256xf32>
    %c15_i32 = arith.constant 15 : i32
    %22 = vector.broadcast %c15_i32 : i32 to vector<1x256xi32>
    %23 = arith.cmpi slt, %17, %22 : vector<1x256xi32>
    %24 = arith.extui %23 : vector<1x256xi1> to vector<1x256xi32>
    %25 = arith.sitofp %24 : vector<1x256xi32> to vector<1x256xf32>
    %c16_i32_5 = arith.constant 16 : i32
    %26 = vector.broadcast %c16_i32_5 : i32 to vector<1x256xi32>
    %27 = arith.cmpi sge, %1, %26 : vector<1x256xi32>
    %28 = arith.extui %27 : vector<1x256xi1> to vector<1x256xi32>
    %29 = arith.sitofp %28 : vector<1x256xi32> to vector<1x256xf32>
    %c240_i32 = arith.constant 240 : i32
    %30 = vector.broadcast %c240_i32 : i32 to vector<1x256xi32>
    %31 = arith.cmpi slt, %1, %30 : vector<1x256xi32>
    %32 = arith.extui %31 : vector<1x256xi1> to vector<1x256xi32>
    %33 = arith.sitofp %32 : vector<1x256xi32> to vector<1x256xf32>
    %c1_i32_6 = arith.constant 1 : i32
    %34 = tpu.dynamic_rotate %0 by %c1_i32_6 dim 1 : vector<8x256xf32>, i32 -> vector<8x256xf32>
    %35 = vector.broadcast %21 : vector<1x256xf32> to vector<8x256xf32>
    %36 = arith.mulf %34, %35 : vector<8x256xf32>
    %c255_i32 = arith.constant 255 : i32
    %37 = tpu.dynamic_rotate %0 by %c255_i32 dim 1 : vector<8x256xf32>, i32 -> vector<8x256xf32>
    %38 = vector.broadcast %25 : vector<1x256xf32> to vector<8x256xf32>
    %39 = arith.mulf %37, %38 : vector<8x256xf32>
    %40 = arith.subf %39, %36 : vector<8x256xf32>
    %cst = arith.constant 2.000000e+00 : f32
    %41 = vector.broadcast %cst : f32 to vector<8x256xf32>
    %42 = arith.mulf %41, %0 : vector<8x256xf32>
    %43 = arith.addf %36, %42 : vector<8x256xf32>
    %44 = arith.addf %43, %39 : vector<8x256xf32>
    %c16_i32_7 = arith.constant 16 : i32
    %45 = tpu.dynamic_rotate %40 by %c16_i32_7 dim 1 : vector<8x256xf32>, i32 -> vector<8x256xf32>
    %46 = vector.broadcast %29 : vector<1x256xf32> to vector<8x256xf32>
    %47 = arith.mulf %45, %46 : vector<8x256xf32>
    %cst_8 = arith.constant 2.000000e+00 : f32
    %48 = vector.broadcast %cst_8 : f32 to vector<8x256xf32>
    %49 = arith.mulf %48, %40 : vector<8x256xf32>
    %50 = arith.addf %47, %49 : vector<8x256xf32>
    %c240_i32_9 = arith.constant 240 : i32
    %51 = tpu.dynamic_rotate %40 by %c240_i32_9 dim 1 : vector<8x256xf32>, i32 -> vector<8x256xf32>
    %52 = vector.broadcast %33 : vector<1x256xf32> to vector<8x256xf32>
    %53 = arith.mulf %51, %52 : vector<8x256xf32>
    %54 = arith.addf %50, %53 : vector<8x256xf32>
    %c240_i32_10 = arith.constant 240 : i32
    %55 = tpu.dynamic_rotate %44 by %c240_i32_10 dim 1 : vector<8x256xf32>, i32 -> vector<8x256xf32>
    %56 = vector.broadcast %33 : vector<1x256xf32> to vector<8x256xf32>
    %57 = arith.mulf %55, %56 : vector<8x256xf32>
    %c16_i32_11 = arith.constant 16 : i32
    %58 = tpu.dynamic_rotate %44 by %c16_i32_11 dim 1 : vector<8x256xf32>, i32 -> vector<8x256xf32>
    %59 = vector.broadcast %29 : vector<1x256xf32> to vector<8x256xf32>
    %60 = arith.mulf %58, %59 : vector<8x256xf32>
    %61 = arith.subf %57, %60 : vector<8x256xf32>
    %c0_12 = arith.constant 0 : index
    %c0_13 = arith.constant 0 : index
    %62 = vector.load %arg2[%c0_12, %c0_13] : memref<8x512xf32, #tpu.memory_space<vmem>>, vector<8x256xf32>
    tpu.vector_store %arg2[%c0_12, %c0_13], %54 {strides = array<i32>} : memref<8x512xf32, #tpu.memory_space<vmem>>, vector<8x256xf32>,
    %c0_14 = arith.constant 0 : index
    %c256 = arith.constant 256 : index
    %63 = vector.load %arg2[%c0_14, %c256] : memref<8x512xf32, #tpu.memory_space<vmem>>, vector<8x256xf32>
    tpu.vector_store %arg2[%c0_14, %c256], %61 {strides = array<i32>} : memref<8x512xf32, #tpu.memory_space<vmem>>, vector<8x256xf32>,
    return
  }
  func.func @transform_0(%arg0: i32) -> (i32, i32) {
    %c0_i32 = arith.constant 0 : i32
    %c0_i32_0 = arith.constant 0 : i32
    return %arg0, %c0_i32 : i32, i32
  }
  func.func @transform_1(%arg0: i32) -> (i32, i32) {
    %c0_i32 = arith.constant 0 : i32
    %c0_i32_0 = arith.constant 0 : i32
    return %arg0, %c0_i32 : i32, i32
  }
}

</mosaic_0001>

<llo_original>
// kernel: tpu_custom_call.1
$region0: #{tpu_custom_call.1}
  #allocation0 [shape = 'u32[]', space=smem, size = 0x4, offset = 0x4, fixed_abs, tag = 'smem constant byte address 0x4 - core index']
  #allocation1 [shape = 'u32[144,128]{1,0:T(1,128)}', space=vmem, size = 0x12000, scoped, tag = 'internal scratch']
  %s0 = inlined_call_operand.hbm [shape: f32[8,256], index: 0, kind: input, shape index: {}]
  %s1 = inlined_call_operand.hbm [shape: f32[8,512], index: 1, kind: output, shape index: {}]
  %s2 = sld [smem:[#allocation0]]
  $region18: #{tpu_custom_call.1} parent=0
    _
  %s4 = ssub.s32 1, %s2
  %s5 = scalar_select 0, %s4, %s2
  $region1: #{tpu_custom_call.1} parent=0
    #allocation2 [shape = 'u8[8192]{0}', space=vmem, size = 0x2000, scoped, tag = 'input window, operand 0, single buffered']
    #allocation3 [shape = 's32[1]{0}', space=sflag, size = 0x4, scoped, tag = 'scoped memory for tpu_custom_call.1']
    #allocation4 [shape = 's32[1]{0}', space=sflag, size = 0x4, scoped, tag = 'scoped memory for tpu_custom_call.1']
    #allocation5 [shape = 'u8[16384]{0}', space=vmem, size = 0x4000, scoped, tag = 'output window, operand 0, single buffered']
    %6 = vsyncpa [#allocation3], 0
    %7 = vsyncpa [#allocation4], 0
    // Predicated region
    $region2: #{tpu_custom_call.1} parent=1 // pred_check
      _
    $region3: #{tpu_custom_call.1} parent=1 // pred_check_branch
      %9 = sbr.rel (0) target = $region5
    $region4: #{tpu_custom_call.1} parent=1 // pred_region
      %s11 = ssub.s32 256, 256
      %12 = vsyncadd [#allocation3], %s11
      %s14 = sshll.u32 [#allocation2], 4
      %s15 = int_to_ptr.vmem [resolvable:$true] %s14
      %17 = dma.hbm_to_vmem [thread:$0]  %s0, 256, %s15, [#allocation3]
    $region5: #{tpu_custom_call.1} parent=1 // pred_fallthru
      _
    // Predicated region
    $region6: #{tpu_custom_call.1} parent=1 // pred_check
      _
    $region7: #{tpu_custom_call.1} parent=1 // pred_check_branch
      %19 = sbr.rel (0) target = $region9
    $region8: #{tpu_custom_call.1} parent=1 // pred_region
      %20 = dma.done [#allocation3], 256
    $region9: #{tpu_custom_call.1} parent=1 // pred_fallthru
      _
    %v21 = vld [vmem:[#allocation2] sm:$0xff]
    %v22 = vld [vmem:[#allocation2 + $0x8] sm:$0xff]
    %v23 = vlaneseq
    %v24 = vand.u32 %v23, 127
    %v25 = vadd.s32 %v24, 128
    %vm26 = vcmp.lt.s32.totalorder %v24, 0
    %v27 = vsub.s32 0, %v24
    %v28 = vsel %vm26, %v27, %v24
    %v29 = vshrl.u32 %v28, 4
    %v30 = vand.u32 %v28, 15
    %v31 = vsub.s32 0, %v30
    %v32 = vsel %vm26, %v31, %v30
    %vm33 = vcmp.lt.s32.totalorder %v25, 0
    %v34 = vsub.s32 0, %v25
    %v35 = vsel %vm33, %v34, %v25
    %v36 = vshrl.u32 %v35, 4
    %v37 = vand.u32 %v35, 15
    %v38 = vsub.s32 0, %v37
    %v39 = vsel %vm33, %v38, %v37
    %vm40 = vcmp.ne.s32.totalorder %v32, 0
    %vm41 = vcmp.ne.s32.totalorder %v39, 0
    %vm42 = vcmp.lt.s32.totalorder %v32, 0
    %vm43 = vcmp.lt.s32.totalorder %v39, 0
    %vm44 = vmand %vm42, %vm40
    %vm45 = vmand %vm43, %vm41
    %v46 = vadd.s32 %v32, 16
    %v47 = vadd.s32 %v39, 16
    %v48 = vsel %vm44, %v46, %v32
    %v49 = vsel %vm45, %v47, %v39
    %vm50 = vcmp.gt.s32.totalorder %v48, 0
    %vm51 = vcmp.gt.s32.totalorder %v49, 0
    %v52 = vsel %vm50, 1, 0
    %v53 = vsel %vm51, 1, 0
    %v54 = vcvt.s32.f32 %v52
    %v55 = vcvt.s32.f32 %v53
    %vm56 = vcmp.lt.s32.totalorder %v48, 15
    %vm57 = vcmp.lt.s32.totalorder %v49, 15
    %v58 = vsel %vm56, 1, 0
    %v59 = vsel %vm57, 1, 0
    %v60 = vcvt.s32.f32 %v58
    %v61 = vcvt.s32.f32 %v59
    %vm62 = vcmp.ge.s32.totalorder %v24, 16
    %vm63 = vcmp.ge.s32.totalorder %v25, 16
    %v64 = vsel %vm62, 1, 0
    %v65 = vsel %vm63, 1, 0
    %v66 = vcvt.s32.f32 %v64
    %v67 = vcvt.s32.f32 %v65
    %vm68 = vcmp.lt.s32.totalorder %v24, 240
    %vm69 = vcmp.lt.s32.totalorder %v25, 240
    %v70 = vsel %vm68, 1, 0
    %v71 = vsel %vm69, 1, 0
    %v72 = vcvt.s32.f32 %v70
    %v73 = vcvt.s32.f32 %v71
    %74 = vrot.lane.b32.xlu0 %v21, 1
    %v75 = vpop.permute.xlu0 %74
    %76 = vrot.lane.b32.xlu0 %v22, 1
    %v77 = vpop.permute.xlu0 %76
    %vm78 = vcmp.lt.s32.totalorder %v24, 1
    %v79 = vsel %vm78, %v75, %v77
    %v80 = vsel %vm78, %v77, %v75
    %v81 = vmul.f32 %v80, %v54
    %v82 = vmul.f32 %v79, %v55
    %83 = vrot.lane.b32.xlu0 %v21, 127
    %v84 = vpop.permute.xlu0 %83
    %85 = vrot.lane.b32.xlu0 %v22, 127
    %v86 = vpop.permute.xlu0 %85
    %vm87 = vcmp.lt.s32.totalorder %v24, 127
    %v88 = vsel %vm87, %v84, %v86
    %v89 = vsel %vm87, %v86, %v84
    %v90 = vmul.f32 %v88, %v60
    %v91 = vmul.f32 %v89, %v61
    %v92 = vsub.f32 %v90, %v81
    %v93 = vsub.f32 %v91, %v82
    %v94 = vmul.f32 %v21, 2.0
    %v95 = vmul.f32 %v22, 2.0
    %v96 = vadd.f32 %v81, %v94
    %v97 = vadd.f32 %v82, %v95
    %v98 = vadd.f32 %v96, %v90
    %v99 = vadd.f32 %v97, %v91
    %100 = vrot.lane.b32.xlu0 %v92, 16
    %v101 = vpop.permute.xlu0 %100
    %102 = vrot.lane.b32.xlu0 %v93, 16
    %v103 = vpop.permute.xlu0 %102
    %vm104 = vcmp.lt.s32.totalorder %v24, 16
    %v105 = vsel %vm104, %v101, %v103
    %v106 = vsel %vm104, %v103, %v101
    %v107 = vmul.f32 %v106, %v66
    %v108 = vmul.f32 %v105, %v67
    %v109 = vmul.f32 %v92, 2.0
    %v110 = vmul.f32 %v93, 2.0
    %v111 = vadd.f32 %v107, %v109
    %v112 = vadd.f32 %v108, %v110
    %113 = vrot.lane.b32.xlu0 %v92, 112
    %v114 = vpop.permute.xlu0 %113
    %115 = vrot.lane.b32.xlu0 %v93, 112
    %v116 = vpop.permute.xlu0 %115
    %vm117 = vcmp.lt.s32.totalorder %v24, 112
    %v118 = vsel %vm117, %v114, %v116
    %v119 = vsel %vm117, %v116, %v114
    %v120 = vmul.f32 %v118, %v72
    %v121 = vmul.f32 %v119, %v73
    %v122 = vadd.f32 %v111, %v120
    %v123 = vadd.f32 %v112, %v121
    %124 = vrot.lane.b32.xlu0 %v98, 112
    %v125 = vpop.permute.xlu0 %124
    %126 = vrot.lane.b32.xlu0 %v99, 112
    %v127 = vpop.permute.xlu0 %126
    %v128 = vsel %vm117, %v125, %v127
    %v129 = vsel %vm117, %v127, %v125
    %v130 = vmul.f32 %v128, %v72
    %v131 = vmul.f32 %v129, %v73
    %132 = vrot.lane.b32.xlu0 %v98, 16
    %v133 = vpop.permute.xlu0 %132
    %134 = vrot.lane.b32.xlu0 %v99, 16
    %v135 = vpop.permute.xlu0 %134
    %v136 = vsel %vm104, %v133, %v135
    %v137 = vsel %vm104, %v135, %v133
    %v138 = vmul.f32 %v137, %v66
    %v139 = vmul.f32 %v136, %v67
    %v140 = vsub.f32 %v130, %v138
    %v141 = vsub.f32 %v131, %v139
    %142 = vst [vmem:[#allocation5] sm:$0xff] %v122
    %143 = vst [vmem:[#allocation5 + $0x8] sm:$0xff] %v123
    %144 = vst [vmem:[#allocation5 + $0x10] sm:$0xff] %v140
    %145 = vst [vmem:[#allocation5 + $0x18] sm:$0xff] %v141
    // Predicated region
    $region10: #{tpu_custom_call.1} parent=1 // pred_check
      _
    $region11: #{tpu_custom_call.1} parent=1 // pred_check_branch
      %147 = sbr.rel (0) target = $region13
    $region12: #{tpu_custom_call.1} parent=1 // pred_region
      %s149 = ssub.s32 512, 512
      %150 = vsyncadd [#allocation4], %s149
      %s152 = sshll.u32 [#allocation5], 4
      %s153 = int_to_ptr.vmem [resolvable:$true] %s152
      %155 = dma.vmem_to_hbm [thread:$0]  %s153, 512, %s1, [#allocation4]
    $region13: #{tpu_custom_call.1} parent=1 // pred_fallthru
      _
    // Predicated region
    $region14: #{tpu_custom_call.1} parent=1 // pred_check
      _
    $region15: #{tpu_custom_call.1} parent=1 // pred_check_branch
      %157 = sbr.rel (0) target = $region17
    $region16: #{tpu_custom_call.1} parent=1 // pred_region
      %158 = dma.done [#allocation4], 512
    $region17: #{tpu_custom_call.1} parent=1 // pred_fallthru
      _
    %159 = vsyncpa [#allocation3], 1
    %160 = vsyncpa [#allocation4], 1

</llo_original>
